<compile_context>
chip_gen: v7x
topology: tpu7x:2x2x1
jax: 0.10.0
libtpu: 0.0.40
codegen_flags: <defaults>
</compile_context>

<pallas_src>
import functools

import jax
import jax.numpy as jnp
from jax.experimental import pallas as pl
from jax.experimental.pallas import tpu as pltpu

IN_DIM = 100
HID_DIM = 50
OUT_DIM = 10
DEFAULT_TILE_B = 512  # multiple of 256 (v6e/v7x MXU) and 128 (v5e MXU)


def _round_up(n, m):
    return ((n + m - 1) // m) * m


def mlp_kernel(*refs, training: bool):
    if training:
        x_ref, mask_ref, w1_ref, b1_ref, w2_ref, b2_ref, o_ref = refs
    else:
        x_ref, w1_ref, b1_ref, w2_ref, b2_ref, o_ref = refs
        mask_ref = None

    # fc1: (TILE_B, 100) @ (100, 50) + (1, 50)
    h = jnp.dot(x_ref[...], w1_ref[...],
                preferred_element_type=jnp.float32) + b1_ref[...]
    # ReLU
    h = jnp.maximum(h, 0.0)
    # Dropout(p=0.5), training mode: mask holds 0.0 (dropped) or 2.0 (kept/scaled).
    if training:
        h = h * mask_ref[...]
    # fc2: (TILE_B, 50) @ (50, 10) + (1, 10)
    out = jnp.dot(h, w2_ref[...], preferred_element_type=jnp.float32) + b2_ref[...]
    o_ref[...] = out.astype(o_ref.dtype)


def make_dropout_mask(key, batch, p=0.5):
    """Dropout scale mask: 0.0 with prob p, 1/(1-p) with prob (1-p)."""
    keep = jax.random.bernoulli(key, 1.0 - p, (batch, HID_DIM))
    return keep.astype(jnp.float32) * (1.0 / (1.0 - p))


def mymodel_forward(x, w1, b1, w2, b2, dropout_mask=None, *,
                    tile_b=DEFAULT_TILE_B):
    """Forward pass. dropout_mask=None -> eval mode (dropout = identity)."""
    training = dropout_mask is not None
    B = x.shape[0]

    # Batch tiling: keep a hardware-friendly tile for big batches, shrink (to a
    # multiple of 8 sublanes) for tiny ones, and pad B up to a tile multiple.
    tb = min(tile_b, _round_up(B, 8))
    B_pad = _round_up(B, tb)
    if B_pad != B:
        x = jnp.pad(x, ((0, B_pad - B), (0, 0)))
        if training:
            dropout_mask = jnp.pad(dropout_mask, ((0, B_pad - B), (0, 0)))
    grid = (B_pad // tb,)

    batch_map = lambda i: (i, 0)     # tiles stream along the batch
    resident_map = lambda i: (0, 0)  # weights/biases resident across all tiles

    in_specs = [pl.BlockSpec((tb, IN_DIM), batch_map)]
    operands = [x]
    if training:
        in_specs.append(pl.BlockSpec((tb, HID_DIM), batch_map))
        operands.append(dropout_mask)
    in_specs += [
        pl.BlockSpec((IN_DIM, HID_DIM), resident_map),
        pl.BlockSpec((1, HID_DIM), resident_map),
        pl.BlockSpec((HID_DIM, OUT_DIM), resident_map),
        pl.BlockSpec((1, OUT_DIM), resident_map),
    ]
    operands += [w1, b1.reshape(1, HID_DIM), w2, b2.reshape(1, OUT_DIM)]

    kernel = functools.partial(mlp_kernel, training=training)
    out = pl.pallas_call(
        kernel,
        out_shape=jax.ShapeDtypeStruct((B_pad, OUT_DIM), jnp.float32),
        grid=grid,
        in_specs=in_specs,
        out_specs=pl.BlockSpec((tb, OUT_DIM), batch_map),
        compiler_params=pltpu.CompilerParams(
            dimension_semantics=("parallel",)),
    )(*operands)
    return out[:B]


def init_params(key):
    """Deterministic PyTorch-style (uniform +/- 1/sqrt(fan_in)) init."""
    k1, k2, k3, k4 = jax.random.split(key, 4)
    bound1 = 1.0 / (IN_DIM ** 0.5)
    bound2 = 1.0 / (HID_DIM ** 0.5)
    w1 = jax.random.uniform(k1, (IN_DIM, HID_DIM), jnp.float32, -bound1, bound1)
    b1 = jax.random.uniform(k2, (HID_DIM,), jnp.float32, -bound1, bound1)
    w2 = jax.random.uniform(k3, (HID_DIM, OUT_DIM), jnp.float32, -bound2, bound2)
    b2 = jax.random.uniform(k4, (OUT_DIM,), jnp.float32, -bound2, bound2)
    return w1, b1, w2, b2


def _ref_forward(x, w1, b1, w2, b2, mask=None):
    h = jnp.maximum(x @ w1 + b1, 0.0)
    if mask is not None:
        h = h * mask
    return h @ w2 + b2


if __name__ == "__main__":
    key = jax.random.PRNGKey(0)
    kx, kp, kd, kx2 = jax.random.split(key, 4)

    w1, b1, w2, b2 = init_params(kp)

    # --- Small batch (B=8): training-mode forward (dropout active) ----------
    B = 8
    x = jax.random.normal(kx, (B, IN_DIM), dtype=jnp.float32)
    mask = make_dropout_mask(kd, B, p=0.5)

    out_train = mymodel_forward(x, w1, b1, w2, b2, dropout_mask=mask)
    out_train = jax.block_until_ready(out_train)
    assert out_train.shape == (B, OUT_DIM)
    ref_train = _ref_forward(x, w1, b1, w2, b2, mask)
    assert jnp.allclose(out_train, ref_train, atol=1e-4, rtol=1e-4)

    # Eval-mode forward (dropout = identity), deterministic sanity check.
    out_eval = mymodel_forward(x, w1, b1, w2, b2)
    out_eval = jax.block_until_ready(out_eval)
    ref_eval = _ref_forward(x, w1, b1, w2, b2)
    assert jnp.allclose(out_eval, ref_eval, atol=1e-4, rtol=1e-4)

    # --- Larger, non-tile-multiple batch: exercises grid + padding path -----
    B2 = 700
    x2 = jax.random.normal(kx2, (B2, IN_DIM), dtype=jnp.float32)
    out2 = mymodel_forward(x2, w1, b1, w2, b2)
    out2 = jax.block_until_ready(out2)
    ref2 = _ref_forward(x2, w1, b1, w2, b2)
    assert out2.shape == (B2, OUT_DIM)
    assert jnp.allclose(out2, ref2, atol=1e-4, rtol=1e-4)

    print("KERNEL_OK")
</pallas_src>

<mosaic_0001>
module attributes {stable_mosaic.version = 11 : i64} {
  func.func @mlp_kernel(%arg0: i32, %arg1: memref<8x100xf32, #tpu.memory_space<vmem>>, %arg2: memref<8x50xf32, #tpu.memory_space<vmem>>, %arg3: memref<100x50xf32, #tpu.memory_space<vmem>>, %arg4: memref<1x50xf32, #tpu.memory_space<vmem>>, %arg5: memref<50x10xf32, #tpu.memory_space<vmem>>, %arg6: memref<1x10xf32, #tpu.memory_space<vmem>>, %arg7: memref<8x10xf32, #tpu.memory_space<vmem>>) attributes {dimension_semantics = [#tpu.dimension_semantics<parallel>], iteration_bounds = array<i64: 1>, scalar_prefetch = 0 : i64, scratch_operands = 0 : i64, tpu.core_type = #tpu.core_type<tc>, window_params = [{transform_indices = @transform_0, window_bounds = array<i64: 8, 100>}, {transform_indices = @transform_1, window_bounds = array<i64: 8, 50>}, {pipeline_mode = #tpu.pipeline_mode<synchronous>, transform_indices = @transform_2, window_bounds = array<i64: 100, 50>}, {pipeline_mode = #tpu.pipeline_mode<synchronous>, transform_indices = @transform_3, window_bounds = array<i64: 1, 50>}, {pipeline_mode = #tpu.pipeline_mode<synchronous>, transform_indices = @transform_4, window_bounds = array<i64: 50, 10>}, {pipeline_mode = #tpu.pipeline_mode<synchronous>, transform_indices = @transform_5, window_bounds = array<i64: 1, 10>}, {transform_indices = @transform_6, window_bounds = array<i64: 8, 10>}]} {
    %c0 = arith.constant 0 : index
    %c0_0 = arith.constant 0 : index
    %0 = vector.load %arg1[%c0, %c0_0] : memref<8x100xf32, #tpu.memory_space<vmem>>, vector<8x100xf32>
    %c0_1 = arith.constant 0 : index
    %c0_2 = arith.constant 0 : index
    %1 = vector.load %arg3[%c0_1, %c0_2] : memref<100x50xf32, #tpu.memory_space<vmem>>, vector<100x50xf32>
    %cst = arith.constant dense<0.000000e+00> : vector<8x50xf32>
    %2 = tpu.matmul %0, %1, %cst {dimension_numbers = #tpu.dot_dimension_numbers<[1], [0], [0], [1], [0, 0, 1, 1], [], []>} : vector<8x100xf32>, vector<100x50xf32>, vector<8x50xf32> -> vector<8x50xf32>
    %c0_3 = arith.constant 0 : index
    %c0_4 = arith.constant 0 : index
    %3 = vector.load %arg4[%c0_3, %c0_4] : memref<1x50xf32, #tpu.memory_space<vmem>>, vector<1x50xf32>
    %4 = vector.broadcast %3 : vector<1x50xf32> to vector<8x50xf32>
    %5 = arith.addf %2, %4 : vector<8x50xf32>
    %cst_5 = arith.constant 0.000000e+00 : f32
    %6 = vector.broadcast %cst_5 : f32 to vector<8x50xf32>
    %7 = arith.maximumf %5, %6 : vector<8x50xf32>
    %c0_6 = arith.constant 0 : index
    %c0_7 = arith.constant 0 : index
    %8 = vector.load %arg2[%c0_6, %c0_7] : memref<8x50xf32, #tpu.memory_space<vmem>>, vector<8x50xf32>
    %9 = arith.mulf %7, %8 : vector<8x50xf32>
    %c0_8 = arith.constant 0 : index
    %c0_9 = arith.constant 0 : index
    %10 = vector.load %arg5[%c0_8, %c0_9] : memref<50x10xf32, #tpu.memory_space<vmem>>, vector<50x10xf32>
    %cst_10 = arith.constant dense<0.000000e+00> : vector<8x10xf32>
    %11 = tpu.matmul %9, %10, %cst_10 {dimension_numbers = #tpu.dot_dimension_numbers<[1], [0], [0], [1], [0, 0, 1, 1], [], []>} : vector<8x50xf32>, vector<50x10xf32>, vector<8x10xf32> -> vector<8x10xf32>
    %c0_11 = arith.constant 0 : index
    %c0_12 = arith.constant 0 : index
    %12 = vector.load %arg6[%c0_11, %c0_12] : memref<1x10xf32, #tpu.memory_space<vmem>>, vector<1x10xf32>
    %13 = vector.broadcast %12 : vector<1x10xf32> to vector<8x10xf32>
    %14 = arith.addf %11, %13 : vector<8x10xf32>
    %c0_13 = arith.constant 0 : index
    %c0_14 = arith.constant 0 : index
    %15 = vector.load %arg7[%c0_13, %c0_14] : memref<8x10xf32, #tpu.memory_space<vmem>>, vector<8x10xf32>
    tpu.vector_store %arg7[%c0_13, %c0_14], %14 {strides = array<i32>} : memref<8x10xf32, #tpu.memory_space<vmem>>, vector<8x10xf32>,
    return
  }
  func.func @transform_0(%arg0: i32) -> (i32, i32) {
    %c0_i32 = arith.constant 0 : i32
    %c0_i32_0 = arith.constant 0 : i32
    return %arg0, %c0_i32 : i32, i32
  }
  func.func @transform_1(%arg0: i32) -> (i32, i32) {
    %c0_i32 = arith.constant 0 : i32
    %c0_i32_0 = arith.constant 0 : i32
    return %arg0, %c0_i32 : i32, i32
  }
  func.func @transform_2(%arg0: i32) -> (i32, i32) {
    %c0_i32 = arith.constant 0 : i32
    %c0_i32_0 = arith.constant 0 : i32
    %c0_i32_1 = arith.constant 0 : i32
    return %c0_i32, %c0_i32_0 : i32, i32
  }
  func.func @transform_3(%arg0: i32) -> (i32, i32) {
    %c0_i32 = arith.constant 0 : i32
    %c0_i32_0 = arith.constant 0 : i32
    %c0_i32_1 = arith.constant 0 : i32
    return %c0_i32, %c0_i32_0 : i32, i32
  }
  func.func @transform_4(%arg0: i32) -> (i32, i32) {
    %c0_i32 = arith.constant 0 : i32
    %c0_i32_0 = arith.constant 0 : i32
    %c0_i32_1 = arith.constant 0 : i32
    return %c0_i32, %c0_i32_0 : i32, i32
  }
  func.func @transform_5(%arg0: i32) -> (i32, i32) {
    %c0_i32 = arith.constant 0 : i32
    %c0_i32_0 = arith.constant 0 : i32
    %c0_i32_1 = arith.constant 0 : i32
    return %c0_i32, %c0_i32_0 : i32, i32
  }
  func.func @transform_6(%arg0: i32) -> (i32, i32) {
    %c0_i32 = arith.constant 0 : i32
    %c0_i32_0 = arith.constant 0 : i32
    return %arg0, %c0_i32 : i32, i32
  }
}

</mosaic_0001>

<llo_original>
// kernel: tpu_custom_call.1
$region0: #{tpu_custom_call.1}
  #allocation0 [shape = 'u32[]', space=smem, size = 0x4, offset = 0x4, fixed_abs, tag = 'smem constant byte address 0x4 - core index']
  #allocation1 [shape = 'u32[144,128]{1,0:T(1,128)}', space=vmem, size = 0x12000, scoped, tag = 'internal scratch']
  %s0 = inlined_call_operand.vmem [shape: f32[8,100], index: 0, kind: input, shape index: {}]
  %s1 = inlined_call_operand.vmem [shape: f32[8,50], index: 1, kind: input, shape index: {}]
  %s2 = inlined_call_operand.vmem [shape: f32[100,50], index: 2, kind: input, shape index: {}]
  %s3 = inlined_call_operand.vmem [shape: f32[1,50], index: 3, kind: input, shape index: {}]
  %s4 = inlined_call_operand.vmem [shape: f32[50,10], index: 4, kind: input, shape index: {}]
  %s5 = inlined_call_operand.vmem [shape: f32[1,10], index: 5, kind: input, shape index: {}]
  %s6 = inlined_call_operand.hbm [shape: f32[8,10], index: 6, kind: output, shape index: {}]
  %s7 = sld [smem:[#allocation0]]
  $region34: #{tpu_custom_call.1} parent=0
    _
  %s9 = ssub.s32 1, %s7
  %s10 = scalar_select 0, %s9, %s7
  $region1: #{tpu_custom_call.1} parent=0
    #allocation2 [shape = 'u8[4096]{0}', space=vmem, size = 0x1000, scoped, tag = 'output window, operand 0, single buffered']
    #allocation3 [shape = 's32[1]{0}', space=sflag, size = 0x4, scoped, tag = 'scoped memory for tpu_custom_call.1']
    %11 = vsyncpa [#allocation3], 0
    // Predicated region
    $region2: #{tpu_custom_call.1} parent=1 // pred_check
      _
    $region3: #{tpu_custom_call.1} parent=1 // pred_check_branch
      %13 = sbr.rel (0) target = $region5
    $region4: #{tpu_custom_call.1} parent=1 // pred_region
      _
    $region5: #{tpu_custom_call.1} parent=1 // pred_fallthru
      _
    // Predicated region
    $region6: #{tpu_custom_call.1} parent=1 // pred_check
      _
    $region7: #{tpu_custom_call.1} parent=1 // pred_check_branch
      %15 = sbr.rel (0) target = $region9
    $region8: #{tpu_custom_call.1} parent=1 // pred_region
      _
    $region9: #{tpu_custom_call.1} parent=1 // pred_fallthru
      _
    // Predicated region
    $region10: #{tpu_custom_call.1} parent=1 // pred_check
      _
    $region11: #{tpu_custom_call.1} parent=1 // pred_check_branch
      %17 = sbr.rel (0) target = $region13
    $region12: #{tpu_custom_call.1} parent=1 // pred_region
      _
    $region13: #{tpu_custom_call.1} parent=1 // pred_fallthru
      _
    // Predicated region
    $region14: #{tpu_custom_call.1} parent=1 // pred_check
      _
    $region15: #{tpu_custom_call.1} parent=1 // pred_check_branch
      %19 = sbr.rel (0) target = $region17
    $region16: #{tpu_custom_call.1} parent=1 // pred_region
      _
    $region17: #{tpu_custom_call.1} parent=1 // pred_fallthru
      _
    // Predicated region
    $region18: #{tpu_custom_call.1} parent=1 // pred_check
      _
    $region19: #{tpu_custom_call.1} parent=1 // pred_check_branch
      %21 = sbr.rel (0) target = $region21
    $region20: #{tpu_custom_call.1} parent=1 // pred_region
      _
    $region21: #{tpu_custom_call.1} parent=1 // pred_fallthru
      _
    // Predicated region
    $region22: #{tpu_custom_call.1} parent=1 // pred_check
      _
    $region23: #{tpu_custom_call.1} parent=1 // pred_check_branch
      %23 = sbr.rel (0) target = $region25
    $region24: #{tpu_custom_call.1} parent=1 // pred_region
      _
    $region25: #{tpu_custom_call.1} parent=1 // pred_fallthru
      _
    %v24 = vld [vmem:[%s0] sm:$0xff]
    %v25 = vld [vmem:[%s2] sm:$0xff]
    %v26 = vld [vmem:[%s2 + $0x8] sm:$0xff]
    %v27 = vld [vmem:[%s2 + $0x10] sm:$0xff]
    %v28 = vld [vmem:[%s2 + $0x18] sm:$0xff]
    %v29 = vld [vmem:[%s2 + $0x20] sm:$0xff]
    %v30 = vld [vmem:[%s2 + $0x28] sm:$0xff]
    %v31 = vld [vmem:[%s2 + $0x30] sm:$0xff]
    %v32 = vld [vmem:[%s2 + $0x38] sm:$0xff]
    %v33 = vld [vmem:[%s2 + $0x40] sm:$0xff]
    %v34 = vld [vmem:[%s2 + $0x48] sm:$0xff]
    %v35 = vld [vmem:[%s2 + $0x50] sm:$0xff]
    %v36 = vld [vmem:[%s2 + $0x58] sm:$0xff]
    %v37 = vld [vmem:[%s2 + $0x60] sm:$0xf]
    %v38 = vld [vmem:[%s3] sm:$0x1]
    %v40 = vlaneseq
    %v41 = vshrl.u32 %v40, 7
    %v42 = vsub.s32 0, %v41
    %v43 = vrot.slane %v38, %v42
    %vm45 = vcmask 818176
    %v47 = vsel %vm45, %v24, 0
    %vm49 = vcmask 1043456
    %v51 = vsel %vm49, %v37, 0
    %53 = vmatprep.subr.mxu0 0.0
    %54 = vmatpush1.msra.mxu0 %v25
    %55 = vmatprep.subr.mxu0 0.0
    %56 = vmatpush1.msra.mxu0 %v26
    %57 = vmatprep.subr.mxu0 0.0
    %58 = vmatpush1.msra.mxu0 %v27
    %59 = vmatprep.subr.mxu0 0.0
    %60 = vmatpush1.msra.mxu0 %v28
    %61 = vmatprep.subr.mxu0 0.0
    %62 = vmatpush1.msra.mxu0 %v29
    %63 = vmatprep.subr.mxu0 0.0
    %64 = vmatpush1.msra.mxu0 %v30
    %65 = vmatprep.subr.mxu0 0.0
    %66 = vmatpush1.msra.mxu0 %v31
    %67 = vmatprep.subr.mxu0 0.0
    %68 = vmatpush1.msra.mxu0 %v32
    %69 = vmatprep.subr.mxu0 0.0
    %70 = vmatpush1.msra.mxu0 %v33
    %71 = vmatprep.subr.mxu0 0.0
    %72 = vmatpush1.msra.mxu0 %v34
    %73 = vmatprep.subr.mxu0 0.0
    %74 = vmatpush1.msra.mxu0 %v35
    %75 = vmatprep.subr.mxu0 0.0
    %76 = vmatpush1.msra.mxu0 %v36
    %77 = vmatprep.subr.mxu0 0.0
    %78 = vmatpush1.msra.mxu0 %v51
    %79 = vmatprep.subr.mxu0 0.0
    %80 = vmatpush1.msra.mxu0 0.0
    %81 = vmatprep.subr.mxu0 0.0
    %82 = vmatpush1.msra.mxu0 0.0
    %83 = vmatprep.subr.mxu0 0.0
    %84 = vmatpush1.msra.mxu0 0.0
    %85 = vmatprep.subr.mxu0 0.0
    %86 = vmatpush1.msra.mxu0 0.0
    %87 = vmatprep.subr.mxu0 0.0
    %88 = vmatpush1.msra.mxu0 0.0
    %89 = vmatprep.subr.mxu0 0.0
    %90 = vmatpush1.msra.mxu0 0.0
    %91 = vmatprep.subr.mxu0 0.0
    %92 = vmatpush1.msra.mxu0 0.0
    %93 = vmatprep.subr.mxu0 0.0
    %94 = vmatpush1.msra.mxu0 0.0
    %95 = vmatprep.subr.mxu0 0.0
    %96 = vmatpush1.msra.mxu0 0.0
    %97 = vmatprep.subr.mxu0 0.0
    %98 = vmatpush1.msra.mxu0 0.0
    %99 = vmatprep.subr.mxu0 0.0
    %100 = vmatpush1.msra.mxu0 0.0
    %101 = vmatprep.subr.mxu0 0.0
    %102 = vmatpush1.msra.mxu0 0.0
    %103 = vmatprep.subr.mxu0 0.0
    %104 = vmatpush1.msra.mxu0 0.0
    %105 = vmatprep.subr.mxu0 0.0
    %106 = vmatpush1.msra.mxu0 0.0
    %107 = vmatprep.subr.mxu0 0.0
    %108 = vmatpush1.msra.mxu0 0.0
    %109 = vmatprep.subr.mxu0 0.0
    %110 = vmatpush1.msra.mxu0 0.0
    %111 = vmatprep.subr.mxu0 0.0
    %112 = vmatpush1.msra.mxu0 0.0
    %113 = vmatprep.subr.mxu0 0.0
    %114 = vmatpush1.msra.mxu0 0.0
    %115 = vmatprep.subr.mxu0 0.0
    %116 = vmatpush1.msra.mxu0 0.0
    %117 = vmatprep.mubr.f32.mxu0 0.0
    %118 = vmatmul.mubr.f32.gmra.mrb[0].mxu0 %v47
    %v119 = vpop.f32.mrb[0].mxu0
    %v120 = vadd.f32 %v43, %v119
    %v121 = vpop.f32.mrb[0].mxu0
    %122 = vdwg.mxu0
    %v123 = vmax.f32 %v120, 0.0
    %v124 = vld [vmem:[%s1] sm:$0xff]
    %v125 = vmul.f32 %v123, %v124
    %v126 = vld [vmem:[%s4] sm:$0xff]
    %v127 = vld [vmem:[%s4 + $0x8] sm:$0xff]
    %v128 = vld [vmem:[%s4 + $0x10] sm:$0xff]
    %v129 = vld [vmem:[%s4 + $0x18] sm:$0xff]
    %v130 = vld [vmem:[%s4 + $0x20] sm:$0xff]
    %v131 = vld [vmem:[%s4 + $0x28] sm:$0xff]
    %v132 = vld [vmem:[%s4 + $0x30] sm:$0x3]
    %v133 = vld [vmem:[%s5] sm:$0x1]
    %v135 = vlaneseq
    %v136 = vshrl.u32 %v135, 7
    %v137 = vsub.s32 0, %v136
    %v138 = vrot.slane %v133, %v137
    %vm140 = vcmask 408576
    %v142 = vsel %vm140, %v125, 0
    %vm144 = vcmask 1041408
    %v146 = vsel %vm144, %v132, 0
    %148 = vmatprep.subr.mxu0 0.0
    %149 = vmatpush1.msra.mxu0 %v126
    %150 = vmatprep.subr.mxu0 0.0
    %151 = vmatpush1.msra.mxu0 %v127
    %152 = vmatprep.subr.mxu0 0.0
    %153 = vmatpush1.msra.mxu0 %v128
    %154 = vmatprep.subr.mxu0 0.0
    %155 = vmatpush1.msra.mxu0 %v129
    %156 = vmatprep.subr.mxu0 0.0
    %157 = vmatpush1.msra.mxu0 %v130
    %158 = vmatprep.subr.mxu0 0.0
    %159 = vmatpush1.msra.mxu0 %v131
    %160 = vmatprep.subr.mxu0 0.0
    %161 = vmatpush1.msra.mxu0 %v146
    %162 = vmatprep.subr.mxu0 0.0
    %163 = vmatpush1.msra.mxu0 0.0
    %164 = vmatprep.subr.mxu0 0.0
    %165 = vmatpush1.msra.mxu0 0.0
    %166 = vmatprep.subr.mxu0 0.0
    %167 = vmatpush1.msra.mxu0 0.0
    %168 = vmatprep.subr.mxu0 0.0
    %169 = vmatpush1.msra.mxu0 0.0
    %170 = vmatprep.subr.mxu0 0.0
    %171 = vmatpush1.msra.mxu0 0.0
    %172 = vmatprep.subr.mxu0 0.0
    %173 = vmatpush1.msra.mxu0 0.0
    %174 = vmatprep.subr.mxu0 0.0
    %175 = vmatpush1.msra.mxu0 0.0
    %176 = vmatprep.subr.mxu0 0.0
    %177 = vmatpush1.msra.mxu0 0.0
    %178 = vmatprep.subr.mxu0 0.0
    %179 = vmatpush1.msra.mxu0 0.0
    %180 = vmatprep.subr.mxu0 0.0
    %181 = vmatpush1.msra.mxu0 0.0
    %182 = vmatprep.subr.mxu0 0.0
    %183 = vmatpush1.msra.mxu0 0.0
    %184 = vmatprep.subr.mxu0 0.0
    %185 = vmatpush1.msra.mxu0 0.0
    %186 = vmatprep.subr.mxu0 0.0
    %187 = vmatpush1.msra.mxu0 0.0
    %188 = vmatprep.subr.mxu0 0.0
    %189 = vmatpush1.msra.mxu0 0.0
    %190 = vmatprep.subr.mxu0 0.0
    %191 = vmatpush1.msra.mxu0 0.0
    %192 = vmatprep.subr.mxu0 0.0
    %193 = vmatpush1.msra.mxu0 0.0
    %194 = vmatprep.subr.mxu0 0.0
    %195 = vmatpush1.msra.mxu0 0.0
    %196 = vmatprep.subr.mxu0 0.0
    %197 = vmatpush1.msra.mxu0 0.0
    %198 = vmatprep.subr.mxu0 0.0
    %199 = vmatpush1.msra.mxu0 0.0
    %200 = vmatprep.subr.mxu0 0.0
    %201 = vmatpush1.msra.mxu0 0.0
    %202 = vmatprep.subr.mxu0 0.0
    %203 = vmatpush1.msra.mxu0 0.0
    %204 = vmatprep.subr.mxu0 0.0
    %205 = vmatpush1.msra.mxu0 0.0
    %206 = vmatprep.subr.mxu0 0.0
    %207 = vmatpush1.msra.mxu0 0.0
    %208 = vmatprep.subr.mxu0 0.0
    %209 = vmatpush1.msra.mxu0 0.0
    %210 = vmatprep.subr.mxu0 0.0
    %211 = vmatpush1.msra.mxu0 0.0
    %212 = vmatprep.mubr.f32.mxu0 0.0
    %213 = vmatmul.mubr.f32.gmra.mrb[0].mxu0 %v142
    %v214 = vpop.f32.mrb[0].mxu0
    %v215 = vadd.f32 %v138, %v214
    %v216 = vpop.f32.mrb[0].mxu0
    %217 = vdwg.mxu0
    %vm218 = vcmask 80896
    %219 = vst.msk [vmem:[#allocation2] sm:$0xff] %vm218, %v215
    // Predicated region
    $region26: #{tpu_custom_call.1} parent=1 // pred_check
      _
    $region27: #{tpu_custom_call.1} parent=1 // pred_check_branch
      %221 = sbr.rel (0) target = $region29
    $region28: #{tpu_custom_call.1} parent=1 // pred_region
      %s223 = ssub.s32 128, 128
      %224 = vsyncadd [#allocation3], %s223
      %s226 = sshll.u32 [#allocation2], 4
      %s227 = int_to_ptr.vmem [resolvable:$true] %s226
      %229 = dma.vmem_to_hbm [thread:$0]  %s227, 128, %s6, [#allocation3]
    $region29: #{tpu_custom_call.1} parent=1 // pred_fallthru
      _
    // Predicated region
    $region30: #{tpu_custom_call.1} parent=1 // pred_check
      _
    $region31: #{tpu_custom_call.1} parent=1 // pred_check_branch
      %231 = sbr.rel (0) target = $region33
    $region32: #{tpu_custom_call.1} parent=1 // pred_region
      %232 = dma.done [#allocation3], 128
    $region33: #{tpu_custom_call.1} parent=1 // pred_fallthru
      _
    %233 = vsyncpa [#allocation3], 1

</llo_original>
